<compile_context>
chip_gen: v7x
topology: tpu7x:2x2x1
jax: 0.10.0
libtpu: 0.0.40
codegen_flags: <defaults>
</compile_context>

<pallas_src>
import jax
import jax.numpy as jnp
from jax.experimental import pallas as pl
from jax.experimental.pallas import tpu as pltpu


def _pointwise_conv1d_kernel(w_ref, x_ref, o_ref):
    # w_ref: (Cout_p, Cin_p) resident across grid steps
    # x_ref: (Cin_p, tile_N) streaming tile
    # o_ref: (Cout_p, tile_N) lane-dense output tile
    o_ref[...] = jnp.dot(
        w_ref[...], x_ref[...], preferred_element_type=jnp.float32
    ).astype(o_ref.dtype)


def _round_up(a, b):
    return (a + b - 1) // b * b


def pointwise_conv1d(x, weight, stride=1, padding=0, tile_n=512):
    """1x1 Conv1d forward.

    x:      (B, Cin, L)
    weight: (Cout, Cin) or (Cout, Cin, 1)  (PyTorch Conv1d layout)
    Returns (B, Cout, L_out) with L_out = floor((L + 2*padding - 1)/stride) + 1.
    """
    if weight.ndim == 3:            # accept PyTorch-shaped (Cout, Cin, 1) weights
        weight = weight[..., 0]

    if padding:
        # kernel_size=1 -> Conv1d padding is plain zero-padding of the length axis
        x = jnp.pad(x, ((0, 0), (0, 0), (padding, padding)))
    if stride != 1:
        # kernel_size=1 -> strided conv == subsampling the (padded) length axis
        x = x[:, :, ::stride]

    B, Cin, L = x.shape
    Cout = weight.shape[0]

    # ---- fuse batch into the matmul N dimension ----
    N = B * L
    x2d = jnp.transpose(x, (1, 0, 2)).reshape(Cin, N)          # (Cin, N)

    # ---- pad to TPU-friendly shapes ----
    cin_p = _round_up(Cin, 8)                                   # f32 sublane multiple
    cout_p = _round_up(Cout, 8)
    n128 = _round_up(N, 128)
    tile = min(_round_up(tile_n, 128), n128)                    # lane-dense tile, <= tile_n
    n_p = _round_up(N, tile)

    x2d = jnp.pad(x2d, ((0, cin_p - Cin), (0, n_p - N)))
    w_p = jnp.pad(weight, ((0, cout_p - Cout), (0, cin_p - Cin)))

    grid = (n_p // tile,)

    out2d = pl.pallas_call(
        _pointwise_conv1d_kernel,
        out_shape=jax.ShapeDtypeStruct((cout_p, n_p), x.dtype),
        grid_spec=pltpu.PrefetchScalarGridSpec(
            num_scalar_prefetch=0,
            grid=grid,
            in_specs=[
                # weight: same block every step -> stays resident in VMEM
                pl.BlockSpec((cout_p, cin_p), lambda n: (0, 0)),
                # x: stream lane-dense N tiles
                pl.BlockSpec((cin_p, tile), lambda n: (0, n)),
            ],
            out_specs=pl.BlockSpec((cout_p, tile), lambda n: (0, n)),
        ),
        compiler_params=pltpu.CompilerParams(
            # Single N-tile axis is fully independent -> megacore/v7x can shard it.
            dimension_semantics=("parallel",),
        ),
    )(w_p, x2d)

    # ---- strip padding and restore (B, Cout, L) ----
    out = out2d[:Cout, :N].reshape(Cout, B, L)
    return jnp.transpose(out, (1, 0, 2))


def reference_pointwise_conv1d(x, weight, stride=1, padding=0):
    if weight.ndim == 3:
        weight = weight[..., 0]
    if padding:
        x = jnp.pad(x, ((0, 0), (0, 0), (padding, padding)))
    if stride != 1:
        x = x[:, :, ::stride]
    return jnp.einsum("oc,bcl->bol", weight, x)


if __name__ == "__main__":
    key = jax.random.PRNGKey(0)
    kx, kw = jax.random.split(key)

    B, Cin, Cout, L = 2, 4, 8, 16

    x = jax.random.normal(kx, (B, Cin, L), dtype=jnp.float32)

    # Deterministic init mimicking PyTorch Conv1d default (kaiming-uniform bound = 1/sqrt(Cin*k))
    bound = 1.0 / (Cin ** 0.5)
    weight = jax.random.uniform(kw, (Cout, Cin), dtype=jnp.float32,
                                minval=-bound, maxval=bound)

    # default stride=1, padding=0
    out = pointwise_conv1d(x, weight)
    out = jax.block_until_ready(out)
    ref = reference_pointwise_conv1d(x, weight)
    assert out.shape == (B, Cout, L)
    assert jnp.allclose(out, ref, atol=1e-5, rtol=1e-5)

    # also exercise stride / padding glue (Conv1d k=1 semantics)
    out_sp = jax.block_until_ready(pointwise_conv1d(x, weight, stride=2, padding=1))
    ref_sp = reference_pointwise_conv1d(x, weight, stride=2, padding=1)
    assert out_sp.shape == ref_sp.shape
    assert jnp.allclose(out_sp, ref_sp, atol=1e-5, rtol=1e-5)

    print("KERNEL_OK")
</pallas_src>

<mosaic_0001>
module attributes {stable_mosaic.version = 11 : i64} {
  func.func @_pointwise_conv1d_kernel(%arg0: i32, %arg1: memref<8x8xf32, #tpu.memory_space<vmem>>, %arg2: memref<8x128xf32, #tpu.memory_space<vmem>>, %arg3: memref<8x128xf32, #tpu.memory_space<vmem>>) attributes {dimension_semantics = [#tpu.dimension_semantics<parallel>], iteration_bounds = array<i64: 1>, scalar_prefetch = 0 : i64, scratch_operands = 0 : i64, tpu.core_type = #tpu.core_type<tc>, window_params = [{pipeline_mode = #tpu.pipeline_mode<synchronous>, transform_indices = @transform_0, window_bounds = array<i64: 8, 8>}, {transform_indices = @transform_1, window_bounds = array<i64: 8, 128>}, {transform_indices = @transform_2, window_bounds = array<i64: 8, 128>}]} {
    %c0 = arith.constant 0 : index
    %c0_0 = arith.constant 0 : index
    %0 = vector.load %arg1[%c0, %c0_0] : memref<8x8xf32, #tpu.memory_space<vmem>>, vector<8x8xf32>
    %c0_1 = arith.constant 0 : index
    %c0_2 = arith.constant 0 : index
    %1 = vector.load %arg2[%c0_1, %c0_2] : memref<8x128xf32, #tpu.memory_space<vmem>>, vector<8x128xf32>
    %cst = arith.constant dense<0.000000e+00> : vector<8x128xf32>
    %2 = tpu.matmul %0, %1, %cst {dimension_numbers = #tpu.dot_dimension_numbers<[1], [0], [0], [1], [0, 0, 1, 1], [], []>} : vector<8x8xf32>, vector<8x128xf32>, vector<8x128xf32> -> vector<8x128xf32>
    %c0_3 = arith.constant 0 : index
    %c0_4 = arith.constant 0 : index
    %3 = vector.load %arg3[%c0_3, %c0_4] : memref<8x128xf32, #tpu.memory_space<vmem>>, vector<8x128xf32>
    tpu.vector_store %arg3[%c0_3, %c0_4], %2 {strides = array<i32>} : memref<8x128xf32, #tpu.memory_space<vmem>>, vector<8x128xf32>,
    return
  }
  func.func @transform_0(%arg0: i32) -> (i32, i32) {
    %c0_i32 = arith.constant 0 : i32
    %c0_i32_0 = arith.constant 0 : i32
    %c0_i32_1 = arith.constant 0 : i32
    return %c0_i32, %c0_i32_0 : i32, i32
  }
  func.func @transform_1(%arg0: i32) -> (i32, i32) {
    %c0_i32 = arith.constant 0 : i32
    %c0_i32_0 = arith.constant 0 : i32
    return %c0_i32, %arg0 : i32, i32
  }
  func.func @transform_2(%arg0: i32) -> (i32, i32) {
    %c0_i32 = arith.constant 0 : i32
    %c0_i32_0 = arith.constant 0 : i32
    return %c0_i32, %arg0 : i32, i32
  }
}

</mosaic_0001>

<llo_original>
// kernel: tpu_custom_call.1
$region0: #{tpu_custom_call.1}
  #allocation0 [shape = 'u32[]', space=smem, size = 0x4, offset = 0x4, fixed_abs, tag = 'smem constant byte address 0x4 - core index']
  #allocation1 [shape = 'u32[144,128]{1,0:T(1,128)}', space=vmem, size = 0x12000, scoped, tag = 'internal scratch']
  %s0 = inlined_call_operand.hbm [shape: f32[8,8], index: 0, kind: input, shape index: {}]
  %s1 = inlined_call_operand.hbm [shape: f32[8,128], index: 1, kind: input, shape index: {}]
  %s2 = inlined_call_operand.hbm [shape: f32[8,128], index: 2, kind: output, shape index: {}]
  %s3 = sld [smem:[#allocation0]]
  $region26: #{tpu_custom_call.1} parent=0
    _
  %s5 = ssub.s32 1, %s3
  %s6 = scalar_select 0, %s5, %s3
  $region1: #{tpu_custom_call.1} parent=0
    #allocation2 [shape = 'u8[4096]{0}', space=vmem, size = 0x1000, scoped, tag = 'input window, operand 0, single buffered']
    #allocation3 [shape = 's32[1]{0}', space=sflag, size = 0x4, scoped, tag = 'scoped memory for tpu_custom_call.1']
    #allocation4 [shape = 's32[1]{0}', space=sflag, size = 0x4, scoped, tag = 'scoped memory for tpu_custom_call.1']
    #allocation5 [shape = 'u8[4096]{0}', space=vmem, size = 0x1000, scoped, tag = 'input window, operand 1, single buffered']
    #allocation6 [shape = 's32[1]{0}', space=sflag, size = 0x4, scoped, tag = 'scoped memory for tpu_custom_call.1']
    #allocation7 [shape = 'u8[4096]{0}', space=vmem, size = 0x1000, scoped, tag = 'output window, operand 0, single buffered']
    %7 = vsyncpa [#allocation3], 0
    %8 = vsyncpa [#allocation6], 0
    %9 = vsyncpa [#allocation4], 0
    // Predicated region
    $region2: #{tpu_custom_call.1} parent=1 // pred_check
      _
    $region3: #{tpu_custom_call.1} parent=1 // pred_check_branch
      %11 = sbr.rel (0) target = $region5
    $region4: #{tpu_custom_call.1} parent=1 // pred_region
      %s13 = ssub.s32 128, 128
      %14 = vsyncadd [#allocation3], %s13
      %s16 = sshll.u32 [#allocation2], 4
      %s17 = int_to_ptr.vmem [resolvable:$true] %s16
      %19 = dma.hbm_to_vmem [thread:$0]  %s0, 128, %s17, [#allocation3]
    $region5: #{tpu_custom_call.1} parent=1 // pred_fallthru
      _
    // Predicated region
    $region6: #{tpu_custom_call.1} parent=1 // pred_check
      _
    $region7: #{tpu_custom_call.1} parent=1 // pred_check_branch
      %21 = sbr.rel (0) target = $region9
    $region8: #{tpu_custom_call.1} parent=1 // pred_region
      %s23 = ssub.s32 128, 128
      %24 = vsyncadd [#allocation6], %s23
      %s26 = sshll.u32 [#allocation5], 4
      %s27 = int_to_ptr.vmem [resolvable:$true] %s26
      %29 = dma.hbm_to_vmem [thread:$0]  %s1, 128, %s27, [#allocation6]
    $region9: #{tpu_custom_call.1} parent=1 // pred_fallthru
      _
    // Predicated region
    $region10: #{tpu_custom_call.1} parent=1 // pred_check
      _
    $region11: #{tpu_custom_call.1} parent=1 // pred_check_branch
      %31 = sbr.rel (0) target = $region13
    $region12: #{tpu_custom_call.1} parent=1 // pred_region
      %32 = dma.done [#allocation3], 128
    $region13: #{tpu_custom_call.1} parent=1 // pred_fallthru
      _
    // Predicated region
    $region14: #{tpu_custom_call.1} parent=1 // pred_check
      _
    $region15: #{tpu_custom_call.1} parent=1 // pred_check_branch
      %34 = sbr.rel (0) target = $region17
    $region16: #{tpu_custom_call.1} parent=1 // pred_region
      %35 = dma.done [#allocation6], 128
    $region17: #{tpu_custom_call.1} parent=1 // pred_fallthru
      _
    %v36 = vld [vmem:[#allocation2] sm:$0xff]
    %v37 = vld [vmem:[#allocation5] sm:$0xff]
    %vm38 = vcmask 64512
    %v40 = vsel %vm38, %v36, 0
    %42 = vmatprep.subr.mxu0 0.0
    %43 = vmatpush1.msra.mxu0 %v37
    %44 = vmatprep.subr.mxu0 0.0
    %45 = vmatpush1.msra.mxu0 0.0
    %46 = vmatprep.subr.mxu0 0.0
    %47 = vmatpush1.msra.mxu0 0.0
    %48 = vmatprep.subr.mxu0 0.0
    %49 = vmatpush1.msra.mxu0 0.0
    %50 = vmatprep.subr.mxu0 0.0
    %51 = vmatpush1.msra.mxu0 0.0
    %52 = vmatprep.subr.mxu0 0.0
    %53 = vmatpush1.msra.mxu0 0.0
    %54 = vmatprep.subr.mxu0 0.0
    %55 = vmatpush1.msra.mxu0 0.0
    %56 = vmatprep.subr.mxu0 0.0
    %57 = vmatpush1.msra.mxu0 0.0
    %58 = vmatprep.subr.mxu0 0.0
    %59 = vmatpush1.msra.mxu0 0.0
    %60 = vmatprep.subr.mxu0 0.0
    %61 = vmatpush1.msra.mxu0 0.0
    %62 = vmatprep.subr.mxu0 0.0
    %63 = vmatpush1.msra.mxu0 0.0
    %64 = vmatprep.subr.mxu0 0.0
    %65 = vmatpush1.msra.mxu0 0.0
    %66 = vmatprep.subr.mxu0 0.0
    %67 = vmatpush1.msra.mxu0 0.0
    %68 = vmatprep.subr.mxu0 0.0
    %69 = vmatpush1.msra.mxu0 0.0
    %70 = vmatprep.subr.mxu0 0.0
    %71 = vmatpush1.msra.mxu0 0.0
    %72 = vmatprep.subr.mxu0 0.0
    %73 = vmatpush1.msra.mxu0 0.0
    %74 = vmatprep.subr.mxu0 0.0
    %75 = vmatpush1.msra.mxu0 0.0
    %76 = vmatprep.subr.mxu0 0.0
    %77 = vmatpush1.msra.mxu0 0.0
    %78 = vmatprep.subr.mxu0 0.0
    %79 = vmatpush1.msra.mxu0 0.0
    %80 = vmatprep.subr.mxu0 0.0
    %81 = vmatpush1.msra.mxu0 0.0
    %82 = vmatprep.subr.mxu0 0.0
    %83 = vmatpush1.msra.mxu0 0.0
    %84 = vmatprep.subr.mxu0 0.0
    %85 = vmatpush1.msra.mxu0 0.0
    %86 = vmatprep.subr.mxu0 0.0
    %87 = vmatpush1.msra.mxu0 0.0
    %88 = vmatprep.subr.mxu0 0.0
    %89 = vmatpush1.msra.mxu0 0.0
    %90 = vmatprep.subr.mxu0 0.0
    %91 = vmatpush1.msra.mxu0 0.0
    %92 = vmatprep.subr.mxu0 0.0
    %93 = vmatpush1.msra.mxu0 0.0
    %94 = vmatprep.subr.mxu0 0.0
    %95 = vmatpush1.msra.mxu0 0.0
    %96 = vmatprep.subr.mxu0 0.0
    %97 = vmatpush1.msra.mxu0 0.0
    %98 = vmatprep.subr.mxu0 0.0
    %99 = vmatpush1.msra.mxu0 0.0
    %100 = vmatprep.subr.mxu0 0.0
    %101 = vmatpush1.msra.mxu0 0.0
    %102 = vmatprep.subr.mxu0 0.0
    %103 = vmatpush1.msra.mxu0 0.0
    %104 = vmatprep.subr.mxu0 0.0
    %105 = vmatpush1.msra.mxu0 0.0
    %106 = vmatprep.mubr.f32.mxu0 0.0
    %107 = vmatmul.mubr.f32.gmra.mrb[0].mxu0 %v40
    %v108 = vpop.f32.mrb[0].mxu0
    %v109 = vadd.f32 0.0, %v108
    %v110 = vpop.f32.mrb[0].mxu0
    %111 = vdwg.mxu0
    %112 = vst [vmem:[#allocation7] sm:$0xff] %v109
    // Predicated region
    $region18: #{tpu_custom_call.1} parent=1 // pred_check
      _
    $region19: #{tpu_custom_call.1} parent=1 // pred_check_branch
      %114 = sbr.rel (0) target = $region21
    $region20: #{tpu_custom_call.1} parent=1 // pred_region
      %s116 = ssub.s32 128, 128
      %117 = vsyncadd [#allocation4], %s116
      %s119 = sshll.u32 [#allocation7], 4
      %s120 = int_to_ptr.vmem [resolvable:$true] %s119
      %122 = dma.vmem_to_hbm [thread:$0]  %s120, 128, %s2, [#allocation4]
    $region21: #{tpu_custom_call.1} parent=1 // pred_fallthru
      _
    // Predicated region
    $region22: #{tpu_custom_call.1} parent=1 // pred_check
      _
    $region23: #{tpu_custom_call.1} parent=1 // pred_check_branch
      %124 = sbr.rel (0) target = $region25
    $region24: #{tpu_custom_call.1} parent=1 // pred_region
      %125 = dma.done [#allocation4], 128
    $region25: #{tpu_custom_call.1} parent=1 // pred_fallthru
      _
    %126 = vsyncpa [#allocation3], 1
    %127 = vsyncpa [#allocation6], 1
    %128 = vsyncpa [#allocation4], 1

</llo_original>
